<compile_context>
chip_gen: v6e
topology: v6e:2x2x1
jax: 0.10.0
libtpu: 0.0.40
codegen_flags: <defaults>
</compile_context>

<pallas_src>
import jax
import jax.numpy as jnp
from jax.experimental import pallas as pl
from jax.experimental.pallas import tpu as pltpu

NOISE = 1e-15


class NormalSpec:
    """Minimal stand-in for the `dist` object passed to VAEHead."""
    size_params = (1, 1)          # loc, scale
    num_params = 2
    # (constraint_kind, bound): mirrors torch.distributions.constraints
    constraints = (("real", None), ("greater_than", 0.0))


def _round_up(x, m):
    return ((x + m - 1) // m) * m


def make_vae_head_kernel(spec):
    """Build a Pallas kernel closed over the (static) dist spec."""

    def kernel(y_ref, w_ref, b_ref, out_ref):
        # Linear layer, producing the output lane-dense:
        #   W (P, H) x y (tile, H) contracted over H -> theta (P, tile).
        theta = jax.lax.dot_general(
            w_ref[...], y_ref[...],
            dimension_numbers=(((1,), (1,)), ((), ())),
            preferred_element_type=jnp.float32,
        ) + b_ref[...]                                     # b is (P, 1), broadcasts

        # Constraint transforms as whole-tile ops: one softplus over the full
        # (P, tile) block (EUP), then per-parameter-row selects (VPU). No
        # width-1 slices, no concatenate -> everything stays on full vregs.
        sp = jax.nn.softplus(theta)
        row = jax.lax.broadcasted_iota(jnp.int32, theta.shape, 0)
        out = theta                                        # "real" -> identity
        for i, (kind, bound) in enumerate(spec.constraints):
            if kind == "greater_than":
                out = jnp.where(row == i, bound + NOISE + sp, out)
            elif kind == "less_than":
                out = jnp.where(row == i, bound - NOISE - sp, out)
            elif kind == "simplex":
                # TODO(synk): simplex (size>1) params not supported in the
                # transposed (P, tile) layout; all-size-1 specs don't hit this.
                pass
        out_ref[...] = out.astype(out_ref.dtype)

    return kernel


def vae_head_forward(y, w, b, spec, *, batch_tile=2048):
    """VAEHead forward.

    y: (B, H) float32 activations.
    w: (P, H) float32 — torch Linear weight layout (out_features, in_features).
    b: (P, 1) float32 — torch Linear bias (column vector).
    Returns (P, B) float32 == torch.stack(params, dim=0).
    """
    B, H = y.shape
    P = w.shape[0]

    # Lane-dense tiles: batch_tile is a multiple of 128; pad B up to a multiple.
    batch_tile = max(128, min(batch_tile, _round_up(B, 128)))
    B_pad = _round_up(B, batch_tile)
    # Keep >= 2 grid steps when the batch allows it (v7x: 2 TensorCores/chip).
    if B_pad // batch_tile < 2 and batch_tile > 128:
        batch_tile = max(128, _round_up(B_pad // 2, 128))
        B_pad = _round_up(B, batch_tile)
    if B_pad != B:
        y = jnp.pad(y, ((0, B_pad - B), (0, 0)))

    kernel = make_vae_head_kernel(spec)
    out = pl.pallas_call(
        kernel,
        out_shape=jax.ShapeDtypeStruct((P, B_pad), jnp.float32),
        grid_spec=pltpu.PrefetchScalarGridSpec(
            num_scalar_prefetch=0,
            grid=(B_pad // batch_tile,),
            in_specs=[
                pl.BlockSpec((batch_tile, H), lambda i: (i, 0)),   # y tile
                pl.BlockSpec((P, H), lambda i: (0, 0)),            # weight (resident)
                pl.BlockSpec((P, 1), lambda i: (0, 0)),            # bias   (resident)
            ],
            out_specs=pl.BlockSpec((P, batch_tile), lambda i: (0, i)),
        ),
        compiler_params=pltpu.CompilerParams(
            dimension_semantics=("parallel",),
        ),
    )(y, w, b)

    return out[:, :B]


def reference_forward(y, w, b, spec):
    theta = y @ w.T + b[:, 0]
    params = []
    pos = 0
    for i in range(spec.num_params):
        v = theta[..., pos: pos + spec.size_params[i]]
        v = jnp.squeeze(v, axis=-1)
        kind, bound = spec.constraints[i]
        if kind == "greater_than":
            v = bound + NOISE + jax.nn.softplus(v)
        elif kind == "less_than":
            v = bound - NOISE - jax.nn.softplus(v)
        elif kind == "simplex":
            v = jax.nn.softmax(v, axis=-1)
        params.append(v)
        pos += spec.size_params[i]
    return jnp.stack(params, axis=0)


if __name__ == "__main__":
    spec = NormalSpec()
    B, H = 256, 32                      # small, but enough for 2 lane-dense tiles
    P = sum(spec.size_params)

    key = jax.random.PRNGKey(0)
    k_y, k_w = jax.random.split(key)

    # Deterministic parameter init mirroring the PyTorch module:
    # xavier_uniform_(weight, gain=calculate_gain('relu')=sqrt(2)); bias.fill_(0.01)
    gain = jnp.sqrt(2.0)
    bound = gain * jnp.sqrt(6.0 / (H + P))
    w = jax.random.uniform(k_w, (P, H), jnp.float32, -bound, bound)   # (out, in)
    b = jnp.full((P, 1), 0.01, dtype=jnp.float32)

    y = jax.random.normal(k_y, (B, H), dtype=jnp.float32)

    out = vae_head_forward(y, w, b, spec)
    out = jax.block_until_ready(out)

    ref = reference_forward(y, w, b, spec)
    assert out.shape == (P, B), out.shape
    assert jnp.allclose(out, ref, atol=1e-5, rtol=1e-5), "mismatch vs reference"

    print("KERNEL_OK")
</pallas_src>

<mosaic_0001>
module attributes {stable_mosaic.version = 11 : i64} {
  func.func @kernel(%arg0: i32, %arg1: memref<128x32xf32, #tpu.memory_space<vmem>>, %arg2: memref<2x32xf32, #tpu.memory_space<vmem>>, %arg3: memref<2x1xf32, #tpu.memory_space<vmem>>, %arg4: memref<2x128xf32, #tpu.memory_space<vmem>>) attributes {dimension_semantics = [#tpu.dimension_semantics<parallel>], iteration_bounds = array<i64: 2>, scalar_prefetch = 0 : i64, scratch_operands = 0 : i64, tpu.core_type = #tpu.core_type<tc>, window_params = [{transform_indices = @transform_0, window_bounds = array<i64: 128, 32>}, {pipeline_mode = #tpu.pipeline_mode<synchronous>, transform_indices = @transform_1, window_bounds = array<i64: 2, 32>}, {pipeline_mode = #tpu.pipeline_mode<synchronous>, transform_indices = @transform_2, window_bounds = array<i64: 2, 1>}, {transform_indices = @transform_3, window_bounds = array<i64: 2, 128>}]} {
    %c0 = arith.constant 0 : index
    %c0_0 = arith.constant 0 : index
    %0 = vector.load %arg2[%c0, %c0_0] : memref<2x32xf32, #tpu.memory_space<vmem>>, vector<2x32xf32>
    %c0_1 = arith.constant 0 : index
    %c0_2 = arith.constant 0 : index
    %1 = vector.load %arg1[%c0_1, %c0_2] : memref<128x32xf32, #tpu.memory_space<vmem>>, vector<128x32xf32>
    %cst = arith.constant dense<0.000000e+00> : vector<2x128xf32>
    %2 = tpu.matmul %0, %1, %cst {dimension_numbers = #tpu.dot_dimension_numbers<[1], [1], [0], [0], [0, 0, 1, 0], [], []>} : vector<2x32xf32>, vector<128x32xf32>, vector<2x128xf32> -> vector<2x128xf32>
    %c0_3 = arith.constant 0 : index
    %c0_4 = arith.constant 0 : index
    %3 = vector.load %arg3[%c0_3, %c0_4] : memref<2x1xf32, #tpu.memory_space<vmem>>, vector<2x1xf32>
    %4 = vector.broadcast %3 : vector<2x1xf32> to vector<2x128xf32>
    %5 = arith.addf %2, %4 : vector<2x128xf32>
    %cst_5 = arith.constant 0.000000e+00 : f32
    %6 = vector.broadcast %cst_5 : f32 to vector<2x128xf32>
    %7 = arith.maximumf %5, %6 : vector<2x128xf32>
    %8 = vector.broadcast %cst_5 : f32 to vector<2x128xf32>
    %9 = arith.subf %5, %8 : vector<2x128xf32>
    %10 = arith.cmpf one, %9, %9 : vector<2x128xf32>
    %11 = vector.broadcast %cst_5 : f32 to vector<2x128xf32>
    %12 = arith.addf %5, %11 : vector<2x128xf32>
    %13 = math.absf %9 : vector<2x128xf32>
    %cst_6 = arith.constant 0.000000e+00 : f32
    %14 = vector.broadcast %cst_6 : f32 to vector<2x128xf32>
    %15 = arith.subf %14, %13 : vector<2x128xf32>
    %16 = math.exp %15 : vector<2x128xf32>
    %17 = math.log1p %16 : vector<2x128xf32>
    %18 = arith.addf %7, %17 : vector<2x128xf32>
    %19 = arith.select %10, %12, %18 : vector<2x128xi1>, vector<2x128xf32>
    %20 = tpu.iota {dimensions = array<i32: 0>} : vector<2x128xi32>
    %c1_i32 = arith.constant 1 : i32
    %21 = vector.broadcast %c1_i32 : i32 to vector<2x128xi32>
    %22 = arith.cmpi eq, %20, %21 : vector<2x128xi32>
    %cst_7 = arith.constant 1.000000e-15 : f32
    %23 = vector.broadcast %cst_7 : f32 to vector<2x128xf32>
    %24 = arith.addf %23, %19 : vector<2x128xf32>
    %25 = arith.select %22, %24, %5 : vector<2x128xi1>, vector<2x128xf32>
    %c0_8 = arith.constant 0 : index
    %c0_9 = arith.constant 0 : index
    %26 = vector.load %arg4[%c0_8, %c0_9] : memref<2x128xf32, #tpu.memory_space<vmem>>, vector<2x128xf32>
    tpu.vector_store %arg4[%c0_8, %c0_9], %25 {strides = array<i32>} : memref<2x128xf32, #tpu.memory_space<vmem>>, vector<2x128xf32>,
    return
  }
  func.func @transform_0(%arg0: i32) -> (i32, i32) {
    %c0_i32 = arith.constant 0 : i32
    %c0_i32_0 = arith.constant 0 : i32
    return %arg0, %c0_i32 : i32, i32
  }
  func.func @transform_1(%arg0: i32) -> (i32, i32) {
    %c0_i32 = arith.constant 0 : i32
    %c0_i32_0 = arith.constant 0 : i32
    %c0_i32_1 = arith.constant 0 : i32
    return %c0_i32, %c0_i32_0 : i32, i32
  }
  func.func @transform_2(%arg0: i32) -> (i32, i32) {
    %c0_i32 = arith.constant 0 : i32
    %c0_i32_0 = arith.constant 0 : i32
    %c0_i32_1 = arith.constant 0 : i32
    return %c0_i32, %c0_i32_0 : i32, i32
  }
  func.func @transform_3(%arg0: i32) -> (i32, i32) {
    %c0_i32 = arith.constant 0 : i32
    %c0_i32_0 = arith.constant 0 : i32
    return %c0_i32, %arg0 : i32, i32
  }
}

</mosaic_0001>

<llo_original>
// kernel: tpu_custom_call.1
$region0: #{tpu_custom_call.1}
  #allocation0 [shape = 'u32[]', space=smem, size = 0x4, offset = 0x4, fixed_abs, tag = 'smem constant byte address 0x4 - core index']
  #allocation1 [shape = 'u32[144,128]{1,0:T(1,128)}', space=vmem, size = 0x12000, scoped, tag = 'internal scratch']
  %s0 = inlined_call_operand.vmem [shape: f32[256,32], index: 0, kind: input, shape index: {}]
  %s1 = inlined_call_operand.vmem [shape: f32[2,32], index: 1, kind: input, shape index: {}]
  %s2 = inlined_call_operand.vmem [shape: f32[2,1], index: 2, kind: input, shape index: {}]
  %s3 = inlined_call_operand.hbm [shape: f32[2,256], index: 3, kind: output, shape index: {}]
  %s4 = sld [smem:[#allocation0]]
  $region45: #{tpu_custom_call.1} parent=0
    _
  %s6 = ssub.s32 1, %s4
  %s7 = scalar_select 0, %s6, %s4
  $region1: #{tpu_custom_call.1} parent=0
    #allocation2 [shape = 'u8[2048]{0}', space=vmem, size = 0x800, scoped, tag = 'output window, operand 0']
    #allocation3 [shape = 's32[2]{0}', space=sflag, size = 0x8, scoped, tag = 'scoped memory for tpu_custom_call.1']
    %8 = vsyncpa [#allocation3], 0
    %s9 = scalar_lea.sflag [#allocation3], 1
    %10 = vsyncpa %s9, 0
    loop: start=0, step=1, limit=4
    $region2: #{tpu_custom_call.1} parent=1 // loop_pre_header
      _
    $region3: #{tpu_custom_call.1} parent=1 // loop_header
      %s12 = sphi 0, %s16
      %p13 = scmp.ge.s32.totalorder %s12, 4
      %s22 = sphi 0, %s24
      %s25 = sphi 0, %s22
      %s26 = sphi 0, %s25
      %s42 = sphi 0, %s26
      %s46 = sphi 0, %s46
      %s48 = sphi 0, %s46
      %s49 = sphi 0, %s48
      %s63 = sphi 0, %s49
      %s67 = sphi 0, %s67
      %s69 = sphi 0, %s67
      %s70 = sphi 0, %s69
      %s84 = sphi 0, %s70
      %s90 = sphi 0, %s92
      %s93 = sphi 0, %s90
      %s94 = sphi 0, %s93
      %s110 = sphi 0, %s94
    $region4: #{tpu_custom_call.1} parent=1 // loop_header_branch
      %15 = sbr.rel (%p13) target = $region8
    $region5: #{tpu_custom_call.1} parent=1 // loop_body
      %s17 = ssub.s32 %s12, 1
      %s18 = ssub.s32 %s12, 2
      %s19 = sadd.s32 %s12, 1
      %s20 = ssub.s32 %s12, %s19
      %p21 = scmp.eq.s32.totalorder %s20, 0
      %s23 = sadd.s32 %s22, 1
      %s24 = scalar_select %p21, %s22, %s23
      %p27 = pneg %p21
      %p28 = scmp.eq.s32.totalorder %s12, 1
      %p29 = por %p27, %p28
      %p30 = scmp.ne.s32.totalorder %s22, %s25
      %p31 = scmp.eq.s32.totalorder %s12, 0
      %p32 = por %p30, %p31
      %p33 = scmp.ne.s32.totalorder %s22, %s25
      %p34 = scmp.eq.s32.totalorder %s17, 1
      %p35 = por %p33, %p34
      %p36 = scmp.ne.s32.totalorder %s25, %s26
      %p37 = scmp.eq.s32.totalorder %s17, 0
      %p38 = por %p36, %p37
      %p39 = scmp.ne.s32.totalorder %s25, %s26
      %p40 = scmp.eq.s32.totalorder %s18, 1
      %p41 = por %p39, %p40
      %p43 = scmp.ne.s32.totalorder %s26, %s42
      %p44 = scmp.eq.s32.totalorder %s18, 0
      %p45 = por %p43, %p44
      %s47 = sadd.s32 %s46, 1
      %p50 = scmp.eq.s32.totalorder %s12, 1
      %p51 = scmp.ne.s32.totalorder %s46, %s48
      %p52 = scmp.eq.s32.totalorder %s12, 0
      %p53 = por %p51, %p52
      %p54 = scmp.ne.s32.totalorder %s46, %s48
      %p55 = scmp.eq.s32.totalorder %s17, 1
      %p56 = por %p54, %p55
      %p57 = scmp.ne.s32.totalorder %s48, %s49
      %p58 = scmp.eq.s32.totalorder %s17, 0
      %p59 = por %p57, %p58
      %p60 = scmp.ne.s32.totalorder %s48, %s49
      %p61 = scmp.eq.s32.totalorder %s18, 1
      %p62 = por %p60, %p61
      %p64 = scmp.ne.s32.totalorder %s49, %s63
      %p65 = scmp.eq.s32.totalorder %s18, 0
      %p66 = por %p64, %p65
      %s68 = sadd.s32 %s67, 1
      %p71 = scmp.eq.s32.totalorder %s12, 1
      %p72 = scmp.ne.s32.totalorder %s67, %s69
      %p73 = scmp.eq.s32.totalorder %s12, 0
      %p74 = por %p72, %p73
      %p75 = scmp.ne.s32.totalorder %s67, %s69
      %p76 = scmp.eq.s32.totalorder %s17, 1
      %p77 = por %p75, %p76
      %p78 = scmp.ne.s32.totalorder %s69, %s70
      %p79 = scmp.eq.s32.totalorder %s17, 0
      %p80 = por %p78, %p79
      %p81 = scmp.ne.s32.totalorder %s69, %s70
      %p82 = scmp.eq.s32.totalorder %s18, 1
      %p83 = por %p81, %p82
      %p85 = scmp.ne.s32.totalorder %s70, %s84
      %p86 = scmp.eq.s32.totalorder %s18, 0
      %p87 = por %p85, %p86
      %s88 = ssub.s32 %s12, %s19
      %p89 = scmp.eq.s32.totalorder %s88, 0
      %s91 = sadd.s32 %s90, 1
      %s92 = scalar_select %p89, %s90, %s91
      %p95 = pneg %p89
      %p96 = scmp.eq.s32.totalorder %s12, 1
      %p97 = por %p95, %p96
      %p98 = scmp.ne.s32.totalorder %s90, %s93
      %p99 = scmp.eq.s32.totalorder %s12, 0
      %p100 = por %p98, %p99
      %p101 = scmp.ne.s32.totalorder %s90, %s93
      %p102 = scmp.eq.s32.totalorder %s17, 1
      %p103 = por %p101, %p102
      %p104 = scmp.ne.s32.totalorder %s93, %s94
      %p105 = scmp.eq.s32.totalorder %s17, 0
      %p106 = por %p104, %p105
      %p107 = scmp.ne.s32.totalorder %s93, %s94
      %p108 = scmp.eq.s32.totalorder %s18, 1
      %p109 = por %p107, %p108
      %p111 = scmp.ne.s32.totalorder %s94, %s110
      %p112 = scmp.eq.s32.totalorder %s18, 0
      %p113 = por %p111, %p112
      %p114 = scmp.le.s32.totalorder 1, %s12
      %p115 = scmp.lt.s32.totalorder %s12, 3
      %p116 = pnand %p114, %p115
      %p117 = pneg %p116
      // Predicated region
      $region9: #{tpu_custom_call.1} parent=5 // pred_check
        _
      $region10: #{tpu_custom_call.1} parent=5 // pred_check_branch
        %119 = sbr.rel (%p116) target = $region12
      $region11: #{tpu_custom_call.1} parent=5 // pred_region
        %s120 = ssub.s32 %s12, 1
        // Predicated region
        $region13: #{tpu_custom_call.1} parent=11 // pred_check
          %p121 = pneg %p59
        $region14: #{tpu_custom_call.1} parent=11 // pred_check_branch
          %123 = sbr.rel (%p121) target = $region16
        $region15: #{tpu_custom_call.1} parent=11 // pred_region
          _
        $region16: #{tpu_custom_call.1} parent=11 // pred_fallthru
          _
        // Predicated region
        $region17: #{tpu_custom_call.1} parent=11 // pred_check
          %p124 = pneg %p80
        $region18: #{tpu_custom_call.1} parent=11 // pred_check_branch
          %126 = sbr.rel (%p124) target = $region20
        $region19: #{tpu_custom_call.1} parent=11 // pred_region
          _
        $region20: #{tpu_custom_call.1} parent=11 // pred_fallthru
          _
      $region12: #{tpu_custom_call.1} parent=5 // pred_fallthru
        _
      %p127 = scmp.lt.s32.totalorder %s12, 2
      // Predicated region
      $region21: #{tpu_custom_call.1} parent=5 // pred_check
        %p128 = pneg %p127
      $region22: #{tpu_custom_call.1} parent=5 // pred_check_branch
        %130 = sbr.rel (%p128) target = $region24
      $region23: #{tpu_custom_call.1} parent=5 // pred_region
        // Predicated region
        $region25: #{tpu_custom_call.1} parent=23 // pred_check
          %p131 = pneg %p32
        $region26: #{tpu_custom_call.1} parent=23 // pred_check_branch
          %133 = sbr.rel (%p131) target = $region28
        $region27: #{tpu_custom_call.1} parent=23 // pred_region
          %s134 = smul.u32 16, %s12
          %p135 = scmp.lt.s32.totalorder %s134, 31
          %s136 = scalar_select %p135, %s134, 31
          %s137 = smul.addr %s136, 8
          %s138 = scalar_lea.vmem %s0, %s137
          %s139 = smul.u32 16, %s12
        $region28: #{tpu_custom_call.1} parent=23 // pred_fallthru
          _
      $region24: #{tpu_custom_call.1} parent=5 // pred_fallthru
        _
      %p140 = scmp.le.s32.totalorder 1, %s12
      %p141 = scmp.lt.s32.totalorder %s12, 3
      %p142 = pnand %p140, %p141
      %p143 = pneg %p142
      // Predicated region
      $region29: #{tpu_custom_call.1} parent=5 // pred_check
        _
      $region30: #{tpu_custom_call.1} parent=5 // pred_check_branch
        %145 = sbr.rel (%p142) target = $region32
      $region31: #{tpu_custom_call.1} parent=5 // pred_region
        %s146 = ssub.s32 %s12, 1
        %s147 = smul.u32 16, %s17
        %p148 = scmp.lt.s32.totalorder %s147, 31
        %s149 = scalar_select %p148, %s147, 31
        %s150 = smul.addr %s149, 8
        %s151 = scalar_lea.vmem %s0, %s150
        %p152 = pneg %p38
        %p153 = pneg %p35
        %p154 = pneg %p59
        %p155 = pneg %p56
        %p156 = pneg %p80
        %p157 = pneg %p77
        %p158 = pneg %p106
        %p159 = pneg %p103
        %s160 = sand.u32 %s93, 1
        %s161 = scalar_lea.sflag [#allocation3], %s160
        %s162 = sand.u32 %s93, 1
        %s163 = smul.addr %s162, 2
        %s164 = scalar_lea.vmem [#allocation2], %s163
        %s165 = smul.u32 16, %s17
        %p166 = scmp.lt.s32.totalorder %s165, 31
        %s167 = scalar_select %p166, %s165, 31
        %s168 = smul.addr %s167, 8
        %s169 = scalar_lea.vmem %s0, %s168
        %s170 = smul.u32 16, %s17
        %v171 = vld [vmem:[%s1] sm:$0x3]
        %v172 = vld [vmem:[%s169] sm:$0xff]
        %v173 = vld [vmem:[%s169 + $0x8] sm:$0xff]
        %v174 = vld [vmem:[%s169 + $0x10] sm:$0xff]
        %v175 = vld [vmem:[%s169 + $0x18] sm:$0xff]
        %v176 = vld [vmem:[%s169 + $0x20] sm:$0xff]
        %v177 = vld [vmem:[%s169 + $0x28] sm:$0xff]
        %v178 = vld [vmem:[%s169 + $0x30] sm:$0xff]
        %v179 = vld [vmem:[%s169 + $0x38] sm:$0xff]
        %v180 = vld [vmem:[%s169 + $0x40] sm:$0xff]
        %v181 = vld [vmem:[%s169 + $0x48] sm:$0xff]
        %v182 = vld [vmem:[%s169 + $0x50] sm:$0xff]
        %v183 = vld [vmem:[%s169 + $0x58] sm:$0xff]
        %v184 = vld [vmem:[%s169 + $0x60] sm:$0xff]
        %v185 = vld [vmem:[%s169 + $0x68] sm:$0xff]
        %v186 = vld [vmem:[%s169 + $0x70] sm:$0xff]
        %v187 = vld [vmem:[%s169 + $0x78] sm:$0xff]
        %v188 = vld [vmem:[%s2] sm:$0x3]
        %190 = vset.pattern.permute.xlu0 0
        %191 = vperm.xlu0 %190, %v188
        %v192 = vpop.permute.xlu0 %191
        %vm194 = vcmask 261120
        %v196 = vsel %vm194, %v171, 0
        %v199 = vsel %vm194, %v172, 0
        %v202 = vsel %vm194, %v173, 0
        %v205 = vsel %vm194, %v174, 0
        %v208 = vsel %vm194, %v175, 0
        %v211 = vsel %vm194, %v176, 0
        %v214 = vsel %vm194, %v177, 0
        %v217 = vsel %vm194, %v178, 0
        %v220 = vsel %vm194, %v179, 0
        %v223 = vsel %vm194, %v180, 0
        %v226 = vsel %vm194, %v181, 0
        %v229 = vsel %vm194, %v182, 0
        %v232 = vsel %vm194, %v183, 0
        %v235 = vsel %vm194, %v184, 0
        %v238 = vsel %vm194, %v185, 0
        %v241 = vsel %vm194, %v186, 0
        %v244 = vsel %vm194, %v187, 0
        %246 = vmatprep.subr.mxu0 0.0
        %247 = vmatpush1.xpose.msra.mxu0 %v244
        %248 = vmatprep.subr.mxu0 0.0
        %249 = vmatpush1.xpose.msra.mxu0 %v241
        %250 = vmatprep.subr.mxu0 0.0
        %251 = vmatpush1.xpose.msra.mxu0 %v238
        %252 = vmatprep.subr.mxu0 0.0
        %253 = vmatpush1.xpose.msra.mxu0 %v235
        %254 = vmatprep.subr.mxu0 0.0
        %255 = vmatpush1.xpose.msra.mxu0 %v232
        %256 = vmatprep.subr.mxu0 0.0
        %257 = vmatpush1.xpose.msra.mxu0 %v229
        %258 = vmatprep.subr.mxu0 0.0
        %259 = vmatpush1.xpose.msra.mxu0 %v226
        %260 = vmatprep.subr.mxu0 0.0
        %261 = vmatpush1.xpose.msra.mxu0 %v223
        %262 = vmatprep.subr.mxu0 0.0
        %263 = vmatpush1.xpose.msra.mxu0 %v220
        %264 = vmatprep.subr.mxu0 0.0
        %265 = vmatpush1.xpose.msra.mxu0 %v217
        %266 = vmatprep.subr.mxu0 0.0
        %267 = vmatpush1.xpose.msra.mxu0 %v214
        %268 = vmatprep.subr.mxu0 0.0
        %269 = vmatpush1.xpose.msra.mxu0 %v211
        %270 = vmatprep.subr.mxu0 0.0
        %271 = vmatpush1.xpose.msra.mxu0 %v208
        %272 = vmatprep.subr.mxu0 0.0
        %273 = vmatpush1.xpose.msra.mxu0 %v205
        %274 = vmatprep.subr.mxu0 0.0
        %275 = vmatpush1.xpose.msra.mxu0 %v202
        %276 = vmatprep.subr.mxu0 0.0
        %277 = vmatpush1.xpose.msra.mxu0 %v199
        %278 = vmatprep.subr.mxu0 0.0
        %279 = vmatpush2.xpose.msra.mxu0 0.0
        %280 = vmatprep.subr.mxu0 0.0
        %281 = vmatpush2.xpose.msra.mxu0 0.0
        %282 = vmatprep.subr.mxu0 0.0
        %283 = vmatpush2.xpose.msra.mxu0 0.0
        %284 = vmatprep.subr.mxu0 0.0
        %285 = vmatpush2.xpose.msra.mxu0 0.0
        %286 = vmatprep.subr.mxu0 0.0
        %287 = vmatpush2.xpose.msra.mxu0 0.0
        %288 = vmatprep.subr.mxu0 0.0
        %289 = vmatpush2.xpose.msra.mxu0 0.0
        %290 = vmatprep.subr.mxu0 0.0
        %291 = vmatpush2.xpose.msra.mxu0 0.0
        %292 = vmatprep.subr.mxu0 0.0
        %293 = vmatpush2.xpose.msra.mxu0 0.0
        %294 = vmatprep.subr.mxu0 0.0
        %295 = vmatpush2.xpose.msra.mxu0 0.0
        %296 = vmatprep.subr.mxu0 0.0
        %297 = vmatpush2.xpose.msra.mxu0 0.0
        %298 = vmatprep.subr.mxu0 0.0
        %299 = vmatpush2.xpose.msra.mxu0 0.0
        %300 = vmatprep.subr.mxu0 0.0
        %301 = vmatpush2.xpose.msra.mxu0 0.0
        %302 = vmatprep.subr.mxu0 0.0
        %303 = vmatpush2.xpose.msra.mxu0 0.0
        %304 = vmatprep.subr.mxu0 0.0
        %305 = vmatpush2.xpose.msra.mxu0 0.0
        %306 = vmatprep.subr.mxu0 0.0
        %307 = vmatpush2.xpose.msra.mxu0 0.0
        %308 = vmatprep.subr.mxu0 0.0
        %309 = vmatpush2.xpose.msra.mxu0 0.0
        %310 = vmatprep.mubr.f32.mxu0 0.0
        %311 = vmatmul.mubr.f32.gmra.mxu0 %v196
        %v312 = vpop.f32.mrf.mxu0
        %v313 = vadd.f32 %v192, %v312
        %v314 = vpop.f32.mrf.mxu0
        %315 = vdwg.mxu0
        %v316 = vmax.f32 %v313, 0.0
        %vm317 = vcmp.ne.f32.partialorder %v313, %v313
        %v318 = vadd.f32 %v313, 0.0
        %v319 = vand.u32 2147483647, %v313
        %v320 = vsub.f32 0.0, %v319
        %v321 = vmul.f32 %v320, 1.442695
        %v322 = vpow.pop %v321
        %v323 = vadd.f32 %v322, 1.0
        %v324 = vlog2.pop %v323
        %v325 = vmul.f32 %v324, 0.6931472
        %v326 = vmul.f32 -0.5, %v322
        %v327 = vadd.f32 %v326, 1.0
        %v328 = vmul.f32 %v327, %v322
        %v329 = vand.u32 2147483647, %v322
        %vm330 = vcmp.lt.f32.partialorder %v329, 0.0004427343
        %v331 = vsel %vm330, %v328, %v325
        %v332 = vadd.f32 %v316, %v331
        %v333 = vsel %vm317, %v318, %v332
        %v334 = vlaneseq
        %v335 = vshrl.u32 %v334, 7
        %vm336 = vcmp.eq.s32.totalorder %v335, 1
        %v337 = vadd.f32 %v333, 1e-15
        %v338 = vsel %vm336, %v337, %v313
        %339 = vst [vmem:[%s164] sm:$0x3] %v338
        %s340 = sand.u32 %s93, 1
        %s341 = scalar_lea.sflag [#allocation3], %s340
        %s342 = sand.u32 %s93, 1
        %s343 = smul.addr %s342, 2
        %s344 = scalar_lea.vmem [#allocation2], %s343
        // Predicated region
        $region33: #{tpu_custom_call.1} parent=31 // pred_check
          %p345 = pneg %p103
        $region34: #{tpu_custom_call.1} parent=31 // pred_check_branch
          %347 = sbr.rel (%p345) target = $region36
        $region35: #{tpu_custom_call.1} parent=31 // pred_region
          %s349 = ssub.s32 32, 32
          %350 = vsyncadd %s341, %s349
          %s351 = smul.addr %s17, 32
          %s352 = scalar_lea.hbm %s3, %s351
          %s354 = sshll.u32 %s344, 4
          %s355 = int_to_ptr.vmem [resolvable:$true] %s354
          %357 = dma.vmem_to_hbm [thread:$0]  %s355, 32, %s352, %s341
        $region36: #{tpu_custom_call.1} parent=31 // pred_fallthru
          _
      $region32: #{tpu_custom_call.1} parent=5 // pred_fallthru
        _
      %p358 = scmp.le.s32.totalorder 2, %s12
      // Predicated region
      $region37: #{tpu_custom_call.1} parent=5 // pred_check
        %p359 = pneg %p358
      $region38: #{tpu_custom_call.1} parent=5 // pred_check_branch
        %361 = sbr.rel (%p359) target = $region40
      $region39: #{tpu_custom_call.1} parent=5 // pred_region
        %s362 = ssub.s32 %s12, 2
        // Predicated region
        $region41: #{tpu_custom_call.1} parent=39 // pred_check
          %p363 = pneg %p109
        $region42: #{tpu_custom_call.1} parent=39 // pred_check_branch
          %365 = sbr.rel (%p363) target = $region44
        $region43: #{tpu_custom_call.1} parent=39 // pred_region
          %s366 = sand.u32 %s94, 1
          %s367 = scalar_lea.sflag [#allocation3], %s366
          %s368 = sand.u32 %s94, 1
          %s369 = smul.addr %s368, 2
          %s370 = scalar_lea.vmem [#allocation2], %s369
          %371 = dma.done %s367, 32
        $region44: #{tpu_custom_call.1} parent=39 // pred_fallthru
          _
      $region40: #{tpu_custom_call.1} parent=5 // pred_fallthru
        _
    $region6: #{tpu_custom_call.1} parent=1 // loop_footer
      %s16 = sadd.s32 1, %s12
    $region7: #{tpu_custom_call.1} parent=1 // loop_footer_branch
      %11 = sbr.rel target = $region3
    $region8: #{tpu_custom_call.1} parent=1 // loop_exit
      _
    %372 = vsyncpa [#allocation3], 1
    %s373 = scalar_lea.sflag [#allocation3], 1
    %374 = vsyncpa %s373, 1

</llo_original>
